<compile_context>
chip_gen: v6e
topology: v6e:2x2x1
jax: 0.10.0
libtpu: 0.0.40
codegen_flags: <defaults>
</compile_context>

<pallas_src>
import jax
import jax.numpy as jnp
from jax.experimental import pallas as pl
from jax.experimental.pallas import tpu as pltpu


def _gradient_kernel(x_ref, o_ref, pad_ref):
    # x_ref  : (TB, 1, H, W)      channel-0 block of the NCHW input (any float dtype)
    # o_ref  : (TB, 1, H+2, W+2)  gradient-magnitude output (float32)
    # pad_ref: (TB, H+4, W+4)     VMEM scratch holding the zero-padded tile
    tb, _, h, w = x_ref.shape
    h_out = h + 2
    w_out = w + 2

    # Zero the halo every grid step (VMEM scratch persists across iterations),
    # then drop the channel-0 tile (cast to f32 in VMEM) into the interior.
    pad_ref[...] = jnp.zeros_like(pad_ref)
    pad_ref[:, 2:2 + h, 2:2 + w] = x_ref[:, 0, :, :].astype(jnp.float32)

    # conv2d with kernel_v: out_v[i, j] = p[i + 2, j + 1] - p[i, j + 1]
    gv = pad_ref[:, 2:2 + h_out, 1:1 + w_out] - pad_ref[:, 0:h_out, 1:1 + w_out]
    # conv2d with kernel_h: out_h[i, j] = p[i + 1, j + 2] - p[i + 1, j]
    gh = pad_ref[:, 1:1 + h_out, 2:2 + w_out] - pad_ref[:, 1:1 + h_out, 0:w_out]

    o_ref[:, 0, :, :] = jnp.sqrt(gv * gv + gh * gh + jnp.float32(1e-6))


def gradient(x, *, vmem_budget_bytes=20 * 1024 * 1024):
    """Pallas equivalent of Gradient.forward.

    Args:
      x: (B, C, H, W) array (NCHW, like PyTorch). Any real dtype; cast to f32
         inside the kernel.
    Returns:
      (B, 1, H + 2, W + 2) float32 array.
    """
    B, C, H, W = x.shape
    h_out, w_out = H + 2, W + 2

    # Per-image VMEM footprint: double-buffered input + output blocks plus the
    # padded scratch tile. Fold as many batch elements per block as the budget
    # allows (bigger DMAs amortize per-grid-step overhead), but keep >= 2 grid
    # steps when B >= 2 so v7x's two TensorCores both get work.
    itemsize = jnp.dtype(x.dtype).itemsize
    per_image = (2 * H * W * itemsize
                 + 2 * h_out * w_out * 4
                 + (H + 4) * (W + 4) * 4)
    tb = int(max(1, min(B, vmem_budget_bytes // per_image)))
    if B >= 2:
        tb = min(tb, (B + 1) // 2)
    grid = (pl.cdiv(B, tb),)
    # TODO(synk): images so large that a single (H, W) slice exceeds the VMEM
    # budget would need H-tiling with a 2-row halo; not needed for typical
    # loss-image sizes.

    return pl.pallas_call(
        _gradient_kernel,
        out_shape=jax.ShapeDtypeStruct((B, 1, h_out, w_out), jnp.float32),
        grid=grid,
        in_specs=[pl.BlockSpec((tb, 1, H, W), lambda b: (b, 0, 0, 0))],
        out_specs=pl.BlockSpec((tb, 1, h_out, w_out), lambda b: (b, 0, 0, 0)),
        scratch_shapes=[pltpu.VMEM((tb, H + 4, W + 4), jnp.float32)],
        compiler_params=pltpu.CompilerParams(
            dimension_semantics=("parallel",),
            vmem_limit_bytes=32 * 1024 * 1024),
    )(x)


def _gradient_ref(x):
    """Pure-JAX reference (same math as the PyTorch module)."""
    B, C, H, W = x.shape
    x0 = x[:, 0].astype(jnp.float32)
    p = jnp.pad(x0, ((0, 0), (2, 2), (2, 2)))
    h_out, w_out = H + 2, W + 2
    gv = p[:, 2:2 + h_out, 1:1 + w_out] - p[:, 0:h_out, 1:1 + w_out]
    gh = p[:, 1:1 + h_out, 2:2 + w_out] - p[:, 1:1 + h_out, 0:w_out]
    return jnp.sqrt(gv * gv + gh * gh + 1e-6)[:, None]


if __name__ == "__main__":
    key = jax.random.PRNGKey(0)
    B, C, H, W = 2, 4, 16, 16
    x = jax.random.normal(key, (B, C, H, W), dtype=jnp.float32)

    out = jax.block_until_ready(gradient(x))
    ref = _gradient_ref(x)

    assert out.shape == (B, 1, H + 2, W + 2), out.shape
    assert jnp.allclose(out, ref, atol=1e-5, rtol=1e-5), "mismatch vs reference"

    print("KERNEL_OK")
</pallas_src>

<mosaic_0001>
module attributes {stable_mosaic.version = 11 : i64} {
  func.func @_gradient_kernel(%arg0: i32, %arg1: memref<1x1x16x16xf32, #tpu.memory_space<vmem>>, %arg2: memref<1x1x18x18xf32, #tpu.memory_space<vmem>>, %arg3: memref<1x20x20xf32, #tpu.memory_space<vmem>>) attributes {dimension_semantics = [#tpu.dimension_semantics<parallel>], iteration_bounds = array<i64: 2>, scalar_prefetch = 0 : i64, scratch_operands = 1 : i64, tpu.core_type = #tpu.core_type<tc>, window_params = [{transform_indices = @transform_0, window_bounds = array<i64: 1, 1, 16, 16>}, {transform_indices = @transform_1, window_bounds = array<i64: 1, 1, 18, 18>}]} {
    %cst = arith.constant 0.000000e+00 : f32
    %0 = vector.broadcast %cst : f32 to vector<1x20x20xf32>
    %c0 = arith.constant 0 : index
    %c0_0 = arith.constant 0 : index
    %c0_1 = arith.constant 0 : index
    %1 = vector.load %arg3[%c0, %c0_0, %c0_1] : memref<1x20x20xf32, #tpu.memory_space<vmem>>, vector<1x20x20xf32>
    tpu.vector_store %arg3[%c0, %c0_0, %c0_1], %0 {strides = array<i32>} : memref<1x20x20xf32, #tpu.memory_space<vmem>>, vector<1x20x20xf32>,
    %c0_2 = arith.constant 0 : index
    %c0_3 = arith.constant 0 : index
    %c0_4 = arith.constant 0 : index
    %c0_5 = arith.constant 0 : index
    %2 = vector.load %arg1[%c0_2, %c0_3, %c0_4, %c0_5] : memref<1x1x16x16xf32, #tpu.memory_space<vmem>>, vector<1x1x16x16xf32>
    %3 = vector.shape_cast %2 : vector<1x1x16x16xf32> to vector<1x16x16xf32>
    %c0_6 = arith.constant 0 : index
    %c2 = arith.constant 2 : index
    %c2_7 = arith.constant 2 : index
    %4 = vector.load %arg3[%c0_6, %c2, %c2_7] : memref<1x20x20xf32, #tpu.memory_space<vmem>>, vector<1x16x16xf32>
    tpu.vector_store %arg3[%c0_6, %c2, %c2_7], %3 {strides = array<i32>} : memref<1x20x20xf32, #tpu.memory_space<vmem>>, vector<1x16x16xf32>,
    %c0_8 = arith.constant 0 : index
    %c2_9 = arith.constant 2 : index
    %c1 = arith.constant 1 : index
    %5 = vector.load %arg3[%c0_8, %c2_9, %c1] : memref<1x20x20xf32, #tpu.memory_space<vmem>>, vector<1x18x18xf32>
    %c0_10 = arith.constant 0 : index
    %c0_11 = arith.constant 0 : index
    %c1_12 = arith.constant 1 : index
    %6 = vector.load %arg3[%c0_10, %c0_11, %c1_12] : memref<1x20x20xf32, #tpu.memory_space<vmem>>, vector<1x18x18xf32>
    %7 = arith.subf %5, %6 : vector<1x18x18xf32>
    %c0_13 = arith.constant 0 : index
    %c1_14 = arith.constant 1 : index
    %c2_15 = arith.constant 2 : index
    %8 = vector.load %arg3[%c0_13, %c1_14, %c2_15] : memref<1x20x20xf32, #tpu.memory_space<vmem>>, vector<1x18x18xf32>
    %c0_16 = arith.constant 0 : index
    %c1_17 = arith.constant 1 : index
    %c0_18 = arith.constant 0 : index
    %9 = vector.load %arg3[%c0_16, %c1_17, %c0_18] : memref<1x20x20xf32, #tpu.memory_space<vmem>>, vector<1x18x18xf32>
    %10 = arith.subf %8, %9 : vector<1x18x18xf32>
    %11 = arith.mulf %7, %7 : vector<1x18x18xf32>
    %12 = arith.mulf %10, %10 : vector<1x18x18xf32>
    %13 = arith.addf %11, %12 : vector<1x18x18xf32>
    %cst_19 = arith.constant 9.99999997E-7 : f32
    %14 = vector.broadcast %cst_19 : f32 to vector<1x18x18xf32>
    %15 = arith.addf %13, %14 : vector<1x18x18xf32>
    %16 = math.sqrt %15 : vector<1x18x18xf32>
    %c0_20 = arith.constant 0 : index
    %c0_21 = arith.constant 0 : index
    %c0_22 = arith.constant 0 : index
    %c0_23 = arith.constant 0 : index
    %17 = vector.load %arg2[%c0_20, %c0_21, %c0_22, %c0_23] : memref<1x1x18x18xf32, #tpu.memory_space<vmem>>, vector<1x1x18x18xf32>
    %18 = vector.shape_cast %17 : vector<1x1x18x18xf32> to vector<1x18x18xf32>
    %19 = vector.shape_cast %16 : vector<1x18x18xf32> to vector<1x1x18x18xf32>
    tpu.vector_store %arg2[%c0_20, %c0_21, %c0_22, %c0_23], %19 {strides = array<i32>} : memref<1x1x18x18xf32, #tpu.memory_space<vmem>>, vector<1x1x18x18xf32>,
    return
  }
  func.func @transform_0(%arg0: i32) -> (i32, i32, i32, i32) {
    %c0_i32 = arith.constant 0 : i32
    %c0_i32_0 = arith.constant 0 : i32
    %c0_i32_1 = arith.constant 0 : i32
    %c0_i32_2 = arith.constant 0 : i32
    return %arg0, %c0_i32, %c0_i32_0, %c0_i32_1 : i32, i32, i32, i32
  }
  func.func @transform_1(%arg0: i32) -> (i32, i32, i32, i32) {
    %c0_i32 = arith.constant 0 : i32
    %c0_i32_0 = arith.constant 0 : i32
    %c0_i32_1 = arith.constant 0 : i32
    %c0_i32_2 = arith.constant 0 : i32
    return %arg0, %c0_i32, %c0_i32_0, %c0_i32_1 : i32, i32, i32, i32
  }
}

</mosaic_0001>

<llo_original>
// kernel: tpu_custom_call.1
$region0: #{tpu_custom_call.1}
  #allocation0 [shape = 'u32[]', space=smem, size = 0x4, offset = 0x4, fixed_abs, tag = 'smem constant byte address 0x4 - core index']
  #allocation1 [shape = 'u32[144,128]{1,0:T(1,128)}', space=vmem, size = 0x12000, scoped, tag = 'internal scratch']
  #allocation2 [shape = 'f32[1,20,20]{2,1,0:T(8,128)}', space=vmem, size = 0x3000, scoped, tag = 'scratch operand']
  %s0 = inlined_call_operand.hbm [shape: f32[2,4,16,16], index: 0, kind: input, shape index: {}]
  %s1 = inlined_call_operand.vmem [shape: f32[2,1,18,18], index: 1, kind: output, shape index: {}]
  %s2 = sld [smem:[#allocation0]]
  $region41: #{tpu_custom_call.1} parent=0
    _
  %s4 = ssub.s32 1, %s2
  %s5 = scalar_select 0, %s4, %s2
  $region1: #{tpu_custom_call.1} parent=0
    #allocation3 [shape = 'u8[16384]{0}', space=vmem, size = 0x4000, scoped, tag = 'input window, operand 0']
    #allocation4 [shape = 's32[2]{0}', space=sflag, size = 0x8, scoped, tag = 'scoped memory for tpu_custom_call.1']
    %6 = vsyncpa [#allocation4], 0
    %s7 = scalar_lea.sflag [#allocation4], 1
    %8 = vsyncpa %s7, 0
    loop: start=0, step=1, limit=4
    $region2: #{tpu_custom_call.1} parent=1 // loop_pre_header
      _
    $region3: #{tpu_custom_call.1} parent=1 // loop_header
      %s10 = sphi 0, %s14
      %p11 = scmp.ge.s32.totalorder %s10, 4
      %s20 = sphi 0, %s22
      %s23 = sphi 0, %s20
      %s24 = sphi 0, %s23
      %s40 = sphi 0, %s24
      %s46 = sphi 0, %s48
      %s49 = sphi 0, %s46
      %s50 = sphi 0, %s49
      %s66 = sphi 0, %s50
    $region4: #{tpu_custom_call.1} parent=1 // loop_header_branch
      %13 = sbr.rel (%p11) target = $region8
    $region5: #{tpu_custom_call.1} parent=1 // loop_body
      %s15 = ssub.s32 %s10, 1
      %s16 = ssub.s32 %s10, 2
      %s17 = sadd.s32 %s10, 1
      %s18 = ssub.s32 %s10, %s17
      %p19 = scmp.eq.s32.totalorder %s18, 0
      %s21 = sadd.s32 %s20, 1
      %s22 = scalar_select %p19, %s20, %s21
      %p25 = pneg %p19
      %p26 = scmp.eq.s32.totalorder %s10, 1
      %p27 = por %p25, %p26
      %p28 = scmp.ne.s32.totalorder %s20, %s23
      %p29 = scmp.eq.s32.totalorder %s10, 0
      %p30 = por %p28, %p29
      %p31 = scmp.ne.s32.totalorder %s20, %s23
      %p32 = scmp.eq.s32.totalorder %s15, 1
      %p33 = por %p31, %p32
      %p34 = scmp.ne.s32.totalorder %s23, %s24
      %p35 = scmp.eq.s32.totalorder %s15, 0
      %p36 = por %p34, %p35
      %p37 = scmp.ne.s32.totalorder %s23, %s24
      %p38 = scmp.eq.s32.totalorder %s16, 1
      %p39 = por %p37, %p38
      %p41 = scmp.ne.s32.totalorder %s24, %s40
      %p42 = scmp.eq.s32.totalorder %s16, 0
      %p43 = por %p41, %p42
      %s44 = ssub.s32 %s10, %s17
      %p45 = scmp.eq.s32.totalorder %s44, 0
      %s47 = sadd.s32 %s46, 1
      %s48 = scalar_select %p45, %s46, %s47
      %p51 = pneg %p45
      %p52 = scmp.eq.s32.totalorder %s10, 1
      %p53 = por %p51, %p52
      %p54 = scmp.ne.s32.totalorder %s46, %s49
      %p55 = scmp.eq.s32.totalorder %s10, 0
      %p56 = por %p54, %p55
      %p57 = scmp.ne.s32.totalorder %s46, %s49
      %p58 = scmp.eq.s32.totalorder %s15, 1
      %p59 = por %p57, %p58
      %p60 = scmp.ne.s32.totalorder %s49, %s50
      %p61 = scmp.eq.s32.totalorder %s15, 0
      %p62 = por %p60, %p61
      %p63 = scmp.ne.s32.totalorder %s49, %s50
      %p64 = scmp.eq.s32.totalorder %s16, 1
      %p65 = por %p63, %p64
      %p67 = scmp.ne.s32.totalorder %s50, %s66
      %p68 = scmp.eq.s32.totalorder %s16, 0
      %p69 = por %p67, %p68
      %p70 = scmp.le.s32.totalorder 1, %s10
      %p71 = scmp.lt.s32.totalorder %s10, 3
      %p72 = pnand %p70, %p71
      %p73 = pneg %p72
      // Predicated region
      $region9: #{tpu_custom_call.1} parent=5 // pred_check
        _
      $region10: #{tpu_custom_call.1} parent=5 // pred_check_branch
        %75 = sbr.rel (%p72) target = $region12
      $region11: #{tpu_custom_call.1} parent=5 // pred_region
        %s76 = ssub.s32 %s10, 1
      $region12: #{tpu_custom_call.1} parent=5 // pred_fallthru
        _
      %p77 = scmp.lt.s32.totalorder %s10, 2
      // Predicated region
      $region13: #{tpu_custom_call.1} parent=5 // pred_check
        %p78 = pneg %p77
      $region14: #{tpu_custom_call.1} parent=5 // pred_check_branch
        %80 = sbr.rel (%p78) target = $region16
      $region15: #{tpu_custom_call.1} parent=5 // pred_region
        // Predicated region
        $region17: #{tpu_custom_call.1} parent=15 // pred_check
          %p81 = pneg %p30
        $region18: #{tpu_custom_call.1} parent=15 // pred_check_branch
          %83 = sbr.rel (%p81) target = $region20
        $region19: #{tpu_custom_call.1} parent=15 // pred_region
          %s84 = sand.u32 %s20, 1
          %s85 = scalar_lea.sflag [#allocation4], %s84
          %s86 = sand.u32 %s20, 1
          %s87 = smul.addr %s86, 16
          %s88 = scalar_lea.vmem [#allocation3], %s87
          %s90 = ssub.s32 256, 256
          %91 = vsyncadd %s85, %s90
          %s92 = smul.addr %s10, 8
          %s93 = smul.addr %s92, 128
          %s94 = scalar_lea.hbm %s0, %s93
          %s95 = sshll.u32 %s88, 4
          %s96 = int_to_ptr.vmem [resolvable:$true] %s95
          %101 = dma.hbm_to_vmem [thread:$0]  %s94, 256, %s96, %s85, 128, 128, 8
        $region20: #{tpu_custom_call.1} parent=15 // pred_fallthru
          _
      $region16: #{tpu_custom_call.1} parent=5 // pred_fallthru
        _
      %p102 = scmp.le.s32.totalorder 1, %s10
      %p103 = scmp.lt.s32.totalorder %s10, 3
      %p104 = pnand %p102, %p103
      %p105 = pneg %p104
      // Predicated region
      $region21: #{tpu_custom_call.1} parent=5 // pred_check
        _
      $region22: #{tpu_custom_call.1} parent=5 // pred_check_branch
        %107 = sbr.rel (%p104) target = $region24
      $region23: #{tpu_custom_call.1} parent=5 // pred_region
        %s108 = ssub.s32 %s10, 1
        %s109 = sand.u32 %s23, 1
        %s110 = scalar_lea.sflag [#allocation4], %s109
        %s111 = sand.u32 %s23, 1
        %s112 = smul.addr %s111, 16
        %s113 = scalar_lea.vmem [#allocation3], %s112
        // Predicated region
        $region25: #{tpu_custom_call.1} parent=23 // pred_check
          %p114 = pneg %p36
        $region26: #{tpu_custom_call.1} parent=23 // pred_check_branch
          %116 = sbr.rel (%p114) target = $region28
        $region27: #{tpu_custom_call.1} parent=23 // pred_region
          %117 = dma.done %s110, 256
        $region28: #{tpu_custom_call.1} parent=23 // pred_fallthru
          _
        %s118 = sand.u32 %s23, 1
        %s119 = scalar_lea.sflag [#allocation4], %s118
        %s120 = sand.u32 %s23, 1
        %s121 = smul.addr %s120, 16
        %s122 = scalar_lea.vmem [#allocation3], %s121
        %p123 = pneg %p36
        %p124 = pneg %p33
        %p125 = pneg %p62
        %p126 = pneg %p59
        %p127 = scmp.lt.s32.totalorder %s15, 1
        %s128 = scalar_select %p127, %s15, 1
        %s129 = smul.addr %s128, 3
        %s130 = smul.addr %s129, 8
        %s131 = scalar_lea.vmem %s1, %s130
        %p132 = scmp.lt.s32.totalorder %s15, 1
        %s133 = scalar_select %p132, %s15, 1
        %s134 = smul.addr %s133, 3
        %s135 = smul.addr %s134, 8
        %s136 = scalar_lea.vmem %s1, %s135
        %vm137 = vcmask 162816
        %138 = vst.msk [vmem:[#allocation2] sm:$0xff] %vm137, 0.0
        %139 = vst.msk [vmem:[#allocation2 + $0x8] sm:$0xff] %vm137, 0.0
        %vm140 = vcmask 158720
        %141 = vst.msk [vmem:[#allocation2 + $0x10] sm:$0xf] %vm140, 0.0
        %v142 = vld [vmem:[%s113] sm:$0xff]
        %v143 = vld [vmem:[%s113 + $0x8] sm:$0xff]
        %146 = vrot.lane.b32.xlu0 %v142, 2
        %v147 = vpop.permute.xlu0 %146
        %148 = vrot.lane.b32.xlu0 %v143, 2
        %v149 = vpop.permute.xlu0 %148
        %vm152 = vcmask 146448
        %153 = vst.msk [vmem:[#allocation2 + $0x2] sm:$0xff] %vm152, %v147
        %154 = vst.msk [vmem:[#allocation2 + $0xa] sm:$0xff] %vm152, %v149
        %v155 = vld [vmem:[#allocation2 + $0x2] sm:$0xff]
        %v156 = vld [vmem:[#allocation2 + $0xa] sm:$0xff]
        %v157 = vld [vmem:[#allocation2 + $0x12] sm:$0x3]
        %v158 = vld [vmem:[#allocation2] sm:$0xff]
        %v159 = vld [vmem:[#allocation2 + $0x8] sm:$0xff]
        %v160 = vld [vmem:[#allocation2 + $0x10] sm:$0x3]
        %v161 = vsub.f32 %v155, %v158
        %v162 = vsub.f32 %v156, %v159
        %v163 = vsub.f32 %v157, %v160
        %v164 = vld [vmem:[#allocation2 + $0x1] sm:$0xff]
        %v165 = vld [vmem:[#allocation2 + $0x9] sm:$0xff]
        %v166 = vld [vmem:[#allocation2 + $0x11] sm:$0x3]
        %170 = vrot.lane.b32.xlu0 %v164, 2
        %v171 = vpop.permute.xlu0 %170
        %172 = vrot.lane.b32.xlu0 %v165, 2
        %v173 = vpop.permute.xlu0 %172
        %174 = vrot.lane.b32.xlu0 %v166, 2
        %v175 = vpop.permute.xlu0 %174
        %v179 = vsub.f32 %v164, %v171
        %v180 = vsub.f32 %v165, %v173
        %v181 = vsub.f32 %v166, %v175
        %v182 = vmul.f32 %v161, %v161
        %v183 = vmul.f32 %v162, %v162
        %v184 = vmul.f32 %v163, %v163
        %v185 = vmul.f32 %v179, %v179
        %v186 = vmul.f32 %v180, %v180
        %v187 = vmul.f32 %v181, %v181
        %191 = vrot.lane.b32.xlu0 %v185, 127
        %v192 = vpop.permute.xlu0 %191
        %193 = vrot.lane.b32.xlu0 %v186, 127
        %v194 = vpop.permute.xlu0 %193
        %195 = vrot.lane.b32.xlu0 %v187, 127
        %v196 = vpop.permute.xlu0 %195
        %v200 = vadd.f32 %v182, %v192
        %v201 = vadd.f32 %v183, %v194
        %v202 = vadd.f32 %v184, %v196
        %v203 = vadd.f32 %v200, 1e-06
        %v204 = vadd.f32 %v201, 1e-06
        %v205 = vadd.f32 %v202, 1e-06
        %v206 = vrsqrt.pop %v203
        %v207 = vmul.f32 %v203, %v206
        %vm208 = vcmp.eq.f32.partialorder %v203, inf
        %v209 = vsel %vm208, %v203, %v207
        %vm210 = vcmp.eq.f32.partialorder %v203, 0.0
        %v211 = vand.u32 %v203, 2147483648
        %v212 = vsel %vm210, %v211, %v209
        %v213 = vrsqrt.pop %v204
        %v214 = vmul.f32 %v204, %v213
        %vm215 = vcmp.eq.f32.partialorder %v204, inf
        %v216 = vsel %vm215, %v204, %v214
        %vm217 = vcmp.eq.f32.partialorder %v204, 0.0
        %v218 = vand.u32 %v204, 2147483648
        %v219 = vsel %vm217, %v218, %v216
        %v220 = vrsqrt.pop %v205
        %v221 = vmul.f32 %v205, %v220
        %vm222 = vcmp.eq.f32.partialorder %v205, inf
        %v223 = vsel %vm222, %v205, %v221
        %vm224 = vcmp.eq.f32.partialorder %v205, 0.0
        %v225 = vand.u32 %v205, 2147483648
        %v226 = vsel %vm224, %v225, %v223
        %230 = vrot.lane.b32.xlu0 %v212, 127
        %v231 = vpop.permute.xlu0 %230
        %232 = vrot.lane.b32.xlu0 %v219, 127
        %v233 = vpop.permute.xlu0 %232
        %234 = vrot.lane.b32.xlu0 %v226, 127
        %v235 = vpop.permute.xlu0 %234
        %vm239 = vcmask 146432
        %240 = vst.msk [vmem:[%s136] sm:$0xff] %vm239, %v231
        %241 = vst.msk [vmem:[%s136 + $0x8] sm:$0xff] %vm239, %v233
        %vm242 = vcmask 140288
        %243 = vst.msk [vmem:[%s136 + $0x10] sm:$0x3] %vm242, %v235
        %p244 = scmp.lt.s32.totalorder %s15, 1
        %s245 = scalar_select %p244, %s15, 1
        %s246 = smul.addr %s245, 3
        %s247 = smul.addr %s246, 8
        %s248 = scalar_lea.vmem %s1, %s247
        // Predicated region
        $region29: #{tpu_custom_call.1} parent=23 // pred_check
          %p249 = pneg %p59
        $region30: #{tpu_custom_call.1} parent=23 // pred_check_branch
          %251 = sbr.rel (%p249) target = $region32
        $region31: #{tpu_custom_call.1} parent=23 // pred_region
          _
        $region32: #{tpu_custom_call.1} parent=23 // pred_fallthru
          _
      $region24: #{tpu_custom_call.1} parent=5 // pred_fallthru
        _
      %p252 = scmp.le.s32.totalorder 2, %s10
      // Predicated region
      $region33: #{tpu_custom_call.1} parent=5 // pred_check
        %p253 = pneg %p252
      $region34: #{tpu_custom_call.1} parent=5 // pred_check_branch
        %255 = sbr.rel (%p253) target = $region36
      $region35: #{tpu_custom_call.1} parent=5 // pred_region
        %s256 = ssub.s32 %s10, 2
        // Predicated region
        $region37: #{tpu_custom_call.1} parent=35 // pred_check
          %p257 = pneg %p65
        $region38: #{tpu_custom_call.1} parent=35 // pred_check_branch
          %259 = sbr.rel (%p257) target = $region40
        $region39: #{tpu_custom_call.1} parent=35 // pred_region
          %p260 = scmp.lt.s32.totalorder %s16, 1
          %s261 = scalar_select %p260, %s16, 1
          %s262 = smul.addr %s261, 3
          %s263 = smul.addr %s262, 8
          %s264 = scalar_lea.vmem %s1, %s263
        $region40: #{tpu_custom_call.1} parent=35 // pred_fallthru
          _
      $region36: #{tpu_custom_call.1} parent=5 // pred_fallthru
        _
    $region6: #{tpu_custom_call.1} parent=1 // loop_footer
      %s14 = sadd.s32 1, %s10
    $region7: #{tpu_custom_call.1} parent=1 // loop_footer_branch
      %9 = sbr.rel target = $region3
    $region8: #{tpu_custom_call.1} parent=1 // loop_exit
      _
    %265 = vsyncpa [#allocation4], 1
    %s266 = scalar_lea.sflag [#allocation4], 1
    %267 = vsyncpa %s266, 1

</llo_original>
